<compile_context>
chip_gen: v6e
topology: v6e:2x2x1
jax: 0.10.0
libtpu: 0.0.40
codegen_flags: <defaults>
</compile_context>

<pallas_src>
import functools

import jax
import jax.numpy as jnp
from jax.experimental import pallas as pl
from jax.experimental.pallas import tpu as pltpu

IMAGENET_MEAN = jnp.array([0.485, 0.456, 0.406], dtype=jnp.float32)
IMAGENET_STD = jnp.array([0.229, 0.224, 0.225], dtype=jnp.float32)


def _round_up(v, m):
    return (v + m - 1) // m * m


@functools.lru_cache(maxsize=None)
def _roll_matches_numpy():
    """Probe the rotate direction of pltpu.roll once (eagerly, outside any jit).

    Returns True if pltpu.roll follows the jnp.roll convention
    (roll(x, s, axis)[i] == x[(i - s) mod n]).
    """

    def kernel(x_ref, o_ref):
        o_ref[...] = pltpu.roll(x_ref[...], 1, axis=0)

    x = jax.lax.broadcasted_iota(jnp.float32, (8, 128), 0)
    y = pl.pallas_call(kernel, out_shape=jax.ShapeDtypeStruct((8, 128), jnp.float32))(x)
    return bool(jax.device_get(y)[0, 0] == 7.0)


# --------------- fused conv3x3(pad=1) + bias + ReLU (+norm / +maxpool) -------
def _conv3x3_kernel(*refs, first_layer, fuse_pool, roll_np):
    if first_layer:
        x_ref, m_ref, s_ref, w_ref, b_ref = refs[:5]
        rest = refs[5:]
    else:
        x_ref, w_ref, b_ref = refs[:3]
        m_ref = s_ref = None
        rest = refs[3:]
    if fuse_pool:
        o_ref, p_ref, xpad_ref, acc_ref = rest
    else:
        o_ref, xpad_ref, acc_ref = rest
        p_ref = None

    _, h, w, cout = o_ref.shape
    cin = x_ref.shape[3]
    wp = xpad_ref.shape[1]                 # padded width, multiple of 8, >= w + 2
    n_flat = xpad_ref.shape[0] * wp        # (h + 2) * wp
    rows = h * wp                          # multiple of 8

    # --- build the zero-padded input tile in VMEM (halo handled in-kernel) ---
    xpad_ref[...] = jnp.zeros_like(xpad_ref)
    x = x_ref[0]
    if first_layer:
        # clamp(0,1) + ImageNet normalization fused into the first conv.
        x = (jnp.clip(x, 0.0, 1.0) - m_ref[...]) * s_ref[...]
    xpad_ref[1:h + 1, 1:w + 1, :] = x

    # --- 9 taps: dx via an XLU sublane roll of the flattened padded tile,
    #     dy via 8-aligned row slices; 9 bf16 MXU matmuls accumulate in f32. ---
    xflat = xpad_ref[...].reshape(n_flat, cin)   # layout-free: wp % 8 == 0
    for dx in range(3):
        if dx == 0:
            shifted = xflat
        else:
            # want shifted[i] == xflat[i + dx]
            amount = (n_flat - dx) if roll_np else dx
            shifted = pltpu.roll(xflat, amount, axis=0)
        for dy in range(3):
            lhs = shifted[dy * wp:dy * wp + rows, :].astype(jnp.bfloat16)
            contrib = jnp.dot(lhs, w_ref[dy * 3 + dx],
                              preferred_element_type=jnp.float32)
            if dx == 0 and dy == 0:
                acc_ref[...] = contrib
            else:
                acc_ref[...] += contrib

    # --- epilogue: bias + ReLU in f32; optional fused 2x2/2 maxpool output ---
    acc = acc_ref[...].reshape(h, wp, cout)[:, :w, :]
    out = jnp.maximum(acc + b_ref[0, :], 0.0)
    o_ref[...] = out.reshape(1, h, w, cout)
    if fuse_pool:
        ho, wo = h // 2, w // 2
        pooled = jnp.max(out.reshape(h, wo, 2, cout), axis=2)
        pooled = jnp.max(pooled.reshape(ho, 2, wo, cout), axis=1)
        p_ref[...] = pooled.reshape(1, ho, wo, cout)


def conv3x3_relu(x, w, b, *, first_layer=False, fuse_pool=False):
    n, h, wd, cin = x.shape
    cout = w.shape[-1]
    wp = _round_up(wd + 2, 8)

    w9 = w.reshape(9, cin, cout).astype(jnp.bfloat16)   # tap-major bf16 MXU weights
    b2 = b.reshape(1, cout).astype(jnp.float32)

    kernel = functools.partial(_conv3x3_kernel, first_layer=first_layer,
                               fuse_pool=fuse_pool, roll_np=_roll_matches_numpy())

    inputs = [x]
    in_specs = [pl.BlockSpec((1, h, wd, cin), lambda i: (i, 0, 0, 0))]
    if first_layer:
        inputs += [IMAGENET_MEAN.reshape(1, 1, 3),
                   (1.0 / IMAGENET_STD).reshape(1, 1, 3)]
        in_specs += [pl.BlockSpec((1, 1, 3), lambda i: (0, 0, 0)),
                     pl.BlockSpec((1, 1, 3), lambda i: (0, 0, 0))]
    inputs += [w9, b2]
    in_specs += [pl.BlockSpec((9, cin, cout), lambda i: (0, 0, 0)),
                 pl.BlockSpec((1, cout), lambda i: (0, 0))]

    out_shapes = [jax.ShapeDtypeStruct((n, h, wd, cout), jnp.float32)]
    out_specs = [pl.BlockSpec((1, h, wd, cout), lambda i: (i, 0, 0, 0))]
    if fuse_pool:
        out_shapes.append(jax.ShapeDtypeStruct((n, h // 2, wd // 2, cout), jnp.float32))
        out_specs.append(pl.BlockSpec((1, h // 2, wd // 2, cout), lambda i: (i, 0, 0, 0)))

    return pl.pallas_call(
        kernel,
        out_shape=tuple(out_shapes) if fuse_pool else out_shapes[0],
        grid=(n,),
        in_specs=in_specs,
        out_specs=tuple(out_specs) if fuse_pool else out_specs[0],
        scratch_shapes=[
            pltpu.VMEM((h + 2, wp, cin), jnp.float32),   # zero-padded input tile
            pltpu.VMEM((h * wp, cout), jnp.float32),     # f32 accumulator
        ],
        compiler_params=pltpu.CompilerParams(dimension_semantics=("parallel",)),
    )(*inputs)


# ------------------------------ parameters ----------------------------------
_VGG_CONVS = [
    ("conv1_1", 3, 64), ("conv1_2", 64, 64),
    ("conv2_1", 64, 128), ("conv2_2", 128, 128),
    ("conv3_1", 128, 256), ("conv3_2", 256, 256), ("conv3_3", 256, 256),
]


def init_params(key):
    params = {}
    for i, (name, cin, cout) in enumerate(_VGG_CONVS):
        kw, kb = jax.random.split(jax.random.fold_in(key, i))
        scale = 1.0 / jnp.sqrt(9.0 * cin)
        w = jax.random.normal(kw, (3, 3, cin, cout), jnp.float32) * scale
        b = jax.random.normal(kb, (cout,), jnp.float32) * 0.01
        params[name] = (w, b)
    return params


# ------------------------------- forward ------------------------------------
@jax.jit
def vgg_feature_extractor(x_nchw, params):
    x = jnp.transpose(x_nchw, (0, 2, 3, 1))                 # NCHW -> NHWC
    # slice1 (clamp + ImageNet normalize fused into conv1_1)
    h = conv3x3_relu(x, *params["conv1_1"], first_layer=True)
    h1, p1 = conv3x3_relu(h, *params["conv1_2"], fuse_pool=True)   # pool fused
    # slice2
    h = conv3x3_relu(p1, *params["conv2_1"])
    h2, p2 = conv3x3_relu(h, *params["conv2_2"], fuse_pool=True)   # pool fused
    # slice3
    h = conv3x3_relu(p2, *params["conv3_1"])
    h = conv3x3_relu(h, *params["conv3_2"])
    h3 = conv3x3_relu(h, *params["conv3_3"])
    to_nchw = lambda t: jnp.transpose(t, (0, 3, 1, 2))      # back to PyTorch layout
    return [to_nchw(h1), to_nchw(h2), to_nchw(h3)]


# ------------------- pure-JAX reference (matching precision) ----------------
@jax.jit
def _ref_forward(x_nchw, params):
    x = jnp.transpose(x_nchw, (0, 2, 3, 1))
    x = jnp.clip(x, 0.0, 1.0)
    x = (x - IMAGENET_MEAN.reshape(1, 1, 1, 3)) * (1.0 / IMAGENET_STD).reshape(1, 1, 1, 3)

    def conv(v, w, b):
        n, hh, ww, _ = v.shape
        vp = jnp.pad(v, ((0, 0), (1, 1), (1, 1), (0, 0)))
        acc = jnp.zeros((n, hh, ww, w.shape[-1]), jnp.float32)
        for dy in range(3):
            for dx in range(3):
                patch = vp[:, dy:dy + hh, dx:dx + ww, :].astype(jnp.bfloat16)
                acc = acc + jax.lax.dot_general(
                    patch, w[dy, dx].astype(jnp.bfloat16),
                    (((3,), (0,)), ((), ())),
                    preferred_element_type=jnp.float32)
        return jnp.maximum(acc + b, 0.0)

    def pool(v):
        n, hh, ww, c = v.shape
        return jnp.max(v.reshape(n, hh // 2, 2, ww // 2, 2, c), axis=(2, 4))

    h1 = conv(conv(x, *params["conv1_1"]), *params["conv1_2"])
    t = conv(pool(h1), *params["conv2_1"])
    h2 = conv(t, *params["conv2_2"])
    t = conv(pool(h2), *params["conv3_1"])
    t = conv(t, *params["conv3_2"])
    h3 = conv(t, *params["conv3_3"])
    to_nchw = lambda a: jnp.transpose(a, (0, 3, 1, 2))
    return [to_nchw(h1), to_nchw(h2), to_nchw(h3)]


if __name__ == "__main__":
    key = jax.random.PRNGKey(0)
    pkey, xkey = jax.random.split(key)
    params = init_params(pkey)

    # Resolve the hardware rotate convention eagerly (must happen outside jit).
    _roll_matches_numpy()

    # Batch=2, RGB (3 channels), 32x32 spatial -- consistent with the module.
    x = jax.random.uniform(xkey, (2, 3, 32, 32), dtype=jnp.float32)

    h1, h2, h3 = vgg_feature_extractor(x, params)
    jax.block_until_ready((h1, h2, h3))

    assert h1.shape == (2, 64, 32, 32)
    assert h2.shape == (2, 128, 16, 16)
    assert h3.shape == (2, 256, 8, 8)
    assert h1.dtype == h2.dtype == h3.dtype == jnp.float32

    # Numerical check against a pure-JAX reference with matching precision
    # (bf16 matmul operands, f32 accumulation).
    r1, r2, r3 = _ref_forward(x, params)
    for name, got, ref in (("h1", h1, r1), ("h2", h2, r2), ("h3", h3, r3)):
        err = float(jnp.max(jnp.abs(got - ref)))
        scale = float(jnp.max(jnp.abs(ref)))
        assert err <= 1e-2 * (1.0 + scale), f"{name}: max|err|={err:.3e} scale={scale:.3e}"

    print("KERNEL_OK")
</pallas_src>

<mosaic_0001>
module attributes {stable_mosaic.version = 11 : i64} {
  func.func @kernel(%arg0: memref<8x128xf32, #tpu.memory_space<vmem>>, %arg1: memref<8x128xf32, #tpu.memory_space<vmem>>) attributes {dimension_semantics = [], scalar_prefetch = 0 : i64, scratch_operands = 0 : i64, tpu.core_type = #tpu.core_type<tc>} {
    %c0 = arith.constant 0 : index
    %c0_0 = arith.constant 0 : index
    %0 = vector.load %arg0[%c0, %c0_0] : memref<8x128xf32, #tpu.memory_space<vmem>>, vector<8x128xf32>
    %c1_i32 = arith.constant 1 : i32
    %1 = tpu.dynamic_rotate %0 by %c1_i32 dim 0 : vector<8x128xf32>, i32 -> vector<8x128xf32>
    %c0_1 = arith.constant 0 : index
    %c0_2 = arith.constant 0 : index
    %2 = vector.load %arg1[%c0_1, %c0_2] : memref<8x128xf32, #tpu.memory_space<vmem>>, vector<8x128xf32>
    tpu.vector_store %arg1[%c0_1, %c0_2], %1 {strides = array<i32>} : memref<8x128xf32, #tpu.memory_space<vmem>>, vector<8x128xf32>,
    return
  }
}

</mosaic_0001>

<llo_original>
// kernel: tpu_custom_call.1
$region0: #{tpu_custom_call.1}
  #allocation0 [shape = 'u32[]', space=smem, size = 0x4, offset = 0x4, fixed_abs, tag = 'smem constant byte address 0x4 - core index']
  #allocation1 [shape = 'u32[144,128]{1,0:T(1,128)}', space=vmem, size = 0x12000, scoped, tag = 'internal scratch']
  %s0 = inlined_call_operand.hbm [shape: f32[8,128], index: 0, kind: input, shape index: {}]
  %s1 = inlined_call_operand.hbm [shape: f32[8,128], index: 1, kind: output, shape index: {}]
  %s2 = sld [smem:[#allocation0]]
  $region18: #{tpu_custom_call.1} parent=0
    _
  %s4 = ssub.s32 1, %s2
  %s5 = scalar_select 0, %s4, %s2
  $region1: #{tpu_custom_call.1} parent=0
    #allocation2 [shape = 'u8[4096]{0}', space=vmem, size = 0x1000, scoped, tag = 'input window, operand 0, single buffered']
    #allocation3 [shape = 's32[1]{0}', space=sflag, size = 0x4, scoped, tag = 'scoped memory for tpu_custom_call.1']
    #allocation4 [shape = 's32[1]{0}', space=sflag, size = 0x4, scoped, tag = 'scoped memory for tpu_custom_call.1']
    #allocation5 [shape = 'u8[4096]{0}', space=vmem, size = 0x1000, scoped, tag = 'output window, operand 0, single buffered']
    %6 = vsyncpa [#allocation3], 0
    %7 = vsyncpa [#allocation4], 0
    // Predicated region
    $region2: #{tpu_custom_call.1} parent=1 // pred_check
      _
    $region3: #{tpu_custom_call.1} parent=1 // pred_check_branch
      %9 = sbr.rel (0) target = $region5
    $region4: #{tpu_custom_call.1} parent=1 // pred_region
      %s11 = ssub.s32 128, 128
      %12 = vsyncadd [#allocation3], %s11
      %s14 = sshll.u32 [#allocation2], 4
      %s15 = int_to_ptr.vmem [resolvable:$true] %s14
      %17 = dma.hbm_to_vmem [thread:$0]  %s0, 128, %s15, [#allocation3]
    $region5: #{tpu_custom_call.1} parent=1 // pred_fallthru
      _
    // Predicated region
    $region6: #{tpu_custom_call.1} parent=1 // pred_check
      _
    $region7: #{tpu_custom_call.1} parent=1 // pred_check_branch
      %19 = sbr.rel (0) target = $region9
    $region8: #{tpu_custom_call.1} parent=1 // pred_region
      %20 = dma.done [#allocation3], 128
    $region9: #{tpu_custom_call.1} parent=1 // pred_fallthru
      _
    %v21 = vld [vmem:[#allocation2] sm:$0xff]
    %v22 = vrot.slane %v21, 7
    %23 = vst [vmem:[#allocation5] sm:$0xff] %v22
    // Predicated region
    $region10: #{tpu_custom_call.1} parent=1 // pred_check
      _
    $region11: #{tpu_custom_call.1} parent=1 // pred_check_branch
      %25 = sbr.rel (0) target = $region13
    $region12: #{tpu_custom_call.1} parent=1 // pred_region
      %s27 = ssub.s32 128, 128
      %28 = vsyncadd [#allocation4], %s27
      %s30 = sshll.u32 [#allocation5], 4
      %s31 = int_to_ptr.vmem [resolvable:$true] %s30
      %33 = dma.vmem_to_hbm [thread:$0]  %s31, 128, %s1, [#allocation4]
    $region13: #{tpu_custom_call.1} parent=1 // pred_fallthru
      _
    // Predicated region
    $region14: #{tpu_custom_call.1} parent=1 // pred_check
      _
    $region15: #{tpu_custom_call.1} parent=1 // pred_check_branch
      %35 = sbr.rel (0) target = $region17
    $region16: #{tpu_custom_call.1} parent=1 // pred_region
      %36 = dma.done [#allocation4], 128
    $region17: #{tpu_custom_call.1} parent=1 // pred_fallthru
      _
    %37 = vsyncpa [#allocation3], 1
    %38 = vsyncpa [#allocation4], 1

</llo_original>
